<compile_context>
chip_gen: v5e
topology: v5e:2x2
jax: 0.10.0
libtpu: 0.0.40
codegen_flags: <defaults>
</compile_context>

<pallas_src>
import jax
import jax.numpy as jnp
from jax import lax
from jax.experimental import pallas as pl
from jax.experimental.pallas import tpu as pltpu


def _round_up(x, m):
    return (x + m - 1) // m * m


# ----------------------------- kernels --------------------------------------


def _linear_single_block_kernel(x_ref, w_ref, b_ref, o_ref):
    # Whole problem in one VMEM block (small-shape fast path).
    acc = lax.dot_general(
        x_ref[...],
        w_ref[...],
        dimension_numbers=(((1,), (1,)), ((), ())),  # x @ W^T, transpose folded
        preferred_element_type=jnp.float32,
    )
    o_ref[...] = acc + b_ref[...]


def _linear_tiled_kernel(x_ref, w_ref, b_ref, o_ref):
    # x_ref: (tm, tk)  w_ref: (tn, tk)  (PyTorch [out, in] layout)
    # b_ref: (1, tn) f32   o_ref: (tm, tn) f32, resident across the K axis.
    k = pl.program_id(2)

    @pl.when(k == 0)
    def _():
        o_ref[...] = jnp.zeros_like(o_ref)

    o_ref[...] += lax.dot_general(
        x_ref[...],
        w_ref[...],
        dimension_numbers=(((1,), (1,)), ((), ())),
        preferred_element_type=jnp.float32,
    )

    @pl.when(k == pl.num_programs(2) - 1)
    def _():
        o_ref[...] += b_ref[...]


# --------------------------- tile selection ----------------------------------


def _pick_mn_tile(dim, max_tile, align):
    # Full dim when it fits (no padding, valid block shape); else the largest
    # aligned tile <= max_tile.  Ragged edges are handled by Pallas clamping.
    if dim <= max_tile:
        return dim
    return max((max_tile // align) * align, align)


def _pick_k_tile(K, max_tk):
    # Returns (tk, Kp).  Kp != K only in the rare case where no lane-aligned
    # divisor of K fits, in which case the K remainder must be zero-padded
    # (it feeds the accumulator, unlike the M/N overhang).
    if K <= max_tk:
        return K, K
    cand = max((max_tk // 128) * 128, 128)
    t = cand
    while t >= 128:
        if K % t == 0:
            return t, K
        t -= 128
    return cand, _round_up(K, cand)


# ------------------------------ wrapper --------------------------------------


def linear_forward(
    x,
    weight,
    bias,
    *,
    tm=256,
    tn=512,
    tk=1024,
    compute_dtype=jnp.bfloat16,
    small_bytes=2 << 20,
):
    """x: [..., N_GENES], weight: [LATENT_DIM, N_GENES] (PyTorch layout),
    bias: [LATENT_DIM].  Returns [..., LATENT_DIM]."""
    *lead, K = x.shape
    N, Kw = weight.shape
    assert K == Kw and bias.shape == (N,)

    out_dtype = x.dtype
    x2 = x.reshape(-1, K)
    M = x2.shape[0]
    b2d = bias.astype(jnp.float32).reshape(1, N)

    # ---- small-shape fast path: one block, no grid, no pipelining overhead.
    total_bytes = (M * K + N * K + M * N) * x2.dtype.itemsize + N * 4
    if total_bytes <= small_bytes:
        out = pl.pallas_call(
            _linear_single_block_kernel,
            out_shape=jax.ShapeDtypeStruct((M, N), jnp.float32),
            cost_estimate=pl.CostEstimate(
                flops=2 * M * K * N,
                transcendentals=0,
                bytes_accessed=int(total_bytes),
            ),
        )(x2, weight, b2d)
        return out.astype(out_dtype).reshape(*lead, N)

    # ---- tiled path: bf16 MXU operands, f32 accumulation into the output.
    cdt = jnp.dtype(compute_dtype)
    x_c = x2.astype(cdt) if x2.dtype != cdt else x2
    w_c = weight.astype(cdt) if weight.dtype != cdt else weight

    tm_ = _pick_mn_tile(M, tm, 8)
    tn_ = _pick_mn_tile(N, tn, 128)
    tk_, Kp = _pick_k_tile(K, tk)

    if Kp != K:
        # Only the K remainder is load-bearing for correctness.
        x_c = jnp.pad(x_c, ((0, 0), (0, Kp - K)))
        w_c = jnp.pad(w_c, ((0, 0), (0, Kp - K)))

    grid = (pl.cdiv(M, tm_), pl.cdiv(N, tn_), Kp // tk_)

    cbytes = cdt.itemsize
    # Double-buffered x/W/out tiles + bias; cap below v7x's 64 MiB VMEM.
    working_set = (
        2 * (tm_ * tk_ + tn_ * tk_) * cbytes + 2 * tm_ * tn_ * 4 + 2 * tn_ * 4
    )
    vmem_limit = int(min(max(2 * working_set, 32 << 20), 48 << 20))

    bytes_accessed = (
        M * Kp * cbytes * grid[1]      # x re-read once per N tile
        + N * Kp * cbytes * grid[0]    # W re-read once per M tile
        + M * N * 4
        + N * 4
    )

    out = pl.pallas_call(
        _linear_tiled_kernel,
        out_shape=jax.ShapeDtypeStruct((M, N), jnp.float32),
        grid_spec=pltpu.PrefetchScalarGridSpec(
            num_scalar_prefetch=0,
            grid=grid,
            in_specs=[
                pl.BlockSpec((tm_, tk_), lambda i, j, k: (i, k)),  # x tile
                pl.BlockSpec((tn_, tk_), lambda i, j, k: (j, k)),  # W tile
                pl.BlockSpec((1, tn_), lambda i, j, k: (0, j)),    # bias tile
            ],
            out_specs=pl.BlockSpec((tm_, tn_), lambda i, j, k: (i, j)),
        ),
        compiler_params=pltpu.CompilerParams(
            dimension_semantics=("parallel", "parallel", "arbitrary"),
            vmem_limit_bytes=vmem_limit,
        ),
        cost_estimate=pl.CostEstimate(
            flops=2 * M * Kp * N,
            transcendentals=0,
            bytes_accessed=int(bytes_accessed),
        ),
    )(x_c, w_c, b2d)

    return out.astype(out_dtype).reshape(*lead, N)


def _reference(x, weight, bias):
    return x @ weight.T + bias


if __name__ == "__main__":
    key = jax.random.PRNGKey(0)

    # Case 1: module's toy shapes (cfg.N_GENES=32, cfg.LATENT_DIM=16, batch=8)
    # -> single-block fast path.
    N_GENES, LATENT_DIM, BATCH = 32, 16, 8
    kx, kw, kb, key = jax.random.split(key, 4)
    bound = 1.0 / (N_GENES ** 0.5)
    x = jax.random.normal(kx, (BATCH, N_GENES), dtype=jnp.float32)
    w = jax.random.uniform(kw, (LATENT_DIM, N_GENES), minval=-bound,
                           maxval=bound, dtype=jnp.float32)
    b = jax.random.uniform(kb, (LATENT_DIM,), minval=-bound, maxval=bound,
                           dtype=jnp.float32)
    out = jax.block_until_ready(linear_forward(x, w, b))
    assert out.shape == (BATCH, LATENT_DIM)
    assert jnp.allclose(out, _reference(x, w, b), atol=2e-2, rtol=2e-2)

    # Case 2: ragged-but-small shapes -> still the fast path (f32).
    M2, K2, N2 = 136, 640, 384
    kx2, kw2, kb2, key = jax.random.split(key, 4)
    bound2 = 1.0 / (K2 ** 0.5)
    x2 = jax.random.normal(kx2, (M2, K2), dtype=jnp.float32)
    w2 = jax.random.uniform(kw2, (N2, K2), minval=-bound2, maxval=bound2,
                            dtype=jnp.float32)
    b2 = jax.random.uniform(kb2, (N2,), minval=-bound2, maxval=bound2,
                            dtype=jnp.float32)
    out2 = jax.block_until_ready(linear_forward(x2, w2, b2))
    assert out2.shape == (M2, N2)
    assert jnp.allclose(out2, _reference(x2, w2, b2), atol=2e-2, rtol=2e-2)

    # Case 3: exercises the tiled path — bf16 operands, multi-tile M/N,
    # multi-step K accumulation and a ragged M edge block (520 = 2*256 + 8).
    M3, K3, N3 = 520, 1536, 1024
    kx3, kw3, kb3, key = jax.random.split(key, 4)
    bound3 = 1.0 / (K3 ** 0.5)
    x3 = jax.random.normal(kx3, (M3, K3), dtype=jnp.float32)
    w3 = jax.random.uniform(kw3, (N3, K3), minval=-bound3, maxval=bound3,
                            dtype=jnp.float32)
    b3 = jax.random.uniform(kb3, (N3,), minval=-bound3, maxval=bound3,
                            dtype=jnp.float32)
    out3 = jax.block_until_ready(linear_forward(x3, w3, b3))
    assert out3.shape == (M3, N3)
    assert jnp.allclose(out3, _reference(x3, w3, b3), atol=2e-2, rtol=2e-2)

    print("KERNEL_OK")
</pallas_src>

<mosaic_0001>
module attributes {stable_mosaic.version = 11 : i64} {
  func.func @_linear_single_block_kernel(%arg0: memref<8x32xf32, #tpu.memory_space<vmem>>, %arg1: memref<16x32xf32, #tpu.memory_space<vmem>>, %arg2: memref<1x16xf32, #tpu.memory_space<vmem>>, %arg3: memref<8x16xf32, #tpu.memory_space<vmem>>) attributes {dimension_semantics = [], scalar_prefetch = 0 : i64, scratch_operands = 0 : i64, tpu.core_type = #tpu.core_type<tc>} {
    %c0 = arith.constant 0 : index
    %c0_0 = arith.constant 0 : index
    %0 = vector.load %arg0[%c0, %c0_0] : memref<8x32xf32, #tpu.memory_space<vmem>>, vector<8x32xf32>
    %c0_1 = arith.constant 0 : index
    %c0_2 = arith.constant 0 : index
    %1 = vector.load %arg1[%c0_1, %c0_2] : memref<16x32xf32, #tpu.memory_space<vmem>>, vector<16x32xf32>
    %cst = arith.constant dense<0.000000e+00> : vector<8x16xf32>
    %2 = tpu.matmul %0, %1, %cst {dimension_numbers = #tpu.dot_dimension_numbers<[1], [1], [0], [0], [0, 0, 1, 0], [], []>} : vector<8x32xf32>, vector<16x32xf32>, vector<8x16xf32> -> vector<8x16xf32>
    %c0_3 = arith.constant 0 : index
    %c0_4 = arith.constant 0 : index
    %3 = vector.load %arg2[%c0_3, %c0_4] : memref<1x16xf32, #tpu.memory_space<vmem>>, vector<1x16xf32>
    %4 = vector.broadcast %3 : vector<1x16xf32> to vector<8x16xf32>
    %5 = arith.addf %2, %4 : vector<8x16xf32>
    %c0_5 = arith.constant 0 : index
    %c0_6 = arith.constant 0 : index
    %6 = vector.load %arg3[%c0_5, %c0_6] : memref<8x16xf32, #tpu.memory_space<vmem>>, vector<8x16xf32>
    tpu.vector_store %arg3[%c0_5, %c0_6], %5 {strides = array<i32>} : memref<8x16xf32, #tpu.memory_space<vmem>>, vector<8x16xf32>,
    return
  }
}

</mosaic_0001>

<llo_original>
// kernel: tpu_custom_call.1
$region0: #{tpu_custom_call.1}
  #allocation0 [shape = 'u32[]', space=smem, size = 0x4, offset = 0x4, fixed_abs, tag = 'smem constant byte address 0x4 - core index']
  #allocation1 [shape = 'u32[72,128]{1,0:T(1,128)}', space=vmem, size = 0x9000, scoped, tag = 'internal scratch']
  %s0 = inlined_call_operand.hbm [shape: f32[8,32], index: 0, kind: input, shape index: {}]
  %s1 = inlined_call_operand.hbm [shape: f32[16,32], index: 1, kind: input, shape index: {}]
  %s2 = inlined_call_operand.vmem [shape: f32[1,16], index: 2, kind: input, shape index: {}]
  %s3 = inlined_call_operand.hbm [shape: f32[8,16], index: 3, kind: output, shape index: {}]
  %s4 = sld [smem:[#allocation0]]
  $region30: #{tpu_custom_call.1} parent=0
    _
  %s6 = ssub.s32 1, %s4
  %s7 = scalar_select 0, %s6, %s4
  $region1: #{tpu_custom_call.1} parent=0
    #allocation2 [shape = 'u8[4096]{0}', space=vmem, size = 0x1000, scoped, tag = 'input window, operand 0, single buffered']
    #allocation3 [shape = 's32[1]{0}', space=sflag, size = 0x4, scoped, tag = 'scoped memory for tpu_custom_call.1']
    #allocation4 [shape = 's32[1]{0}', space=sflag, size = 0x4, scoped, tag = 'scoped memory for tpu_custom_call.1']
    #allocation5 [shape = 'u8[8192]{0}', space=vmem, size = 0x2000, scoped, tag = 'input window, operand 1, single buffered']
    #allocation6 [shape = 's32[1]{0}', space=sflag, size = 0x4, scoped, tag = 'scoped memory for tpu_custom_call.1']
    #allocation7 [shape = 'u8[4096]{0}', space=vmem, size = 0x1000, scoped, tag = 'output window, operand 0, single buffered']
    %8 = vsyncpa [#allocation3], 0
    %9 = vsyncpa [#allocation6], 0
    %10 = vsyncpa [#allocation4], 0
    // Predicated region
    $region2: #{tpu_custom_call.1} parent=1 // pred_check
      _
    $region3: #{tpu_custom_call.1} parent=1 // pred_check_branch
      %12 = sbr.rel (0) target = $region5
    $region4: #{tpu_custom_call.1} parent=1 // pred_region
      %14 = vsyncadd [#allocation3], 0
      %s16 = sshll.u32 %s0, 4
      %s17 = int_to_ptr.hbm [resolvable:$true] %s16
      %s18 = sshll.u32 [#allocation2], 4
      %s19 = int_to_ptr.vmem [resolvable:$true] %s18
      %21 = dma.hbm_to_vmem [thread:$0]  %s17, 128, %s19, [#allocation3]
    $region5: #{tpu_custom_call.1} parent=1 // pred_fallthru
      _
    // Predicated region
    $region6: #{tpu_custom_call.1} parent=1 // pred_check
      _
    $region7: #{tpu_custom_call.1} parent=1 // pred_check_branch
      %23 = sbr.rel (0) target = $region9
    $region8: #{tpu_custom_call.1} parent=1 // pred_region
      %25 = vsyncadd [#allocation6], 0
      %s26 = sshll.u32 %s1, 4
      %s27 = int_to_ptr.hbm [resolvable:$true] %s26
      %s28 = sshll.u32 [#allocation5], 4
      %s29 = int_to_ptr.vmem [resolvable:$true] %s28
      %34 = dma.hbm_to_vmem [thread:$0]  %s27, 256, %s29, [#allocation6], 128, 128, 8
    $region9: #{tpu_custom_call.1} parent=1 // pred_fallthru
      _
    // Predicated region
    $region10: #{tpu_custom_call.1} parent=1 // pred_check
      _
    $region11: #{tpu_custom_call.1} parent=1 // pred_check_branch
      %36 = sbr.rel (0) target = $region13
    $region12: #{tpu_custom_call.1} parent=1 // pred_region
      _
    $region13: #{tpu_custom_call.1} parent=1 // pred_fallthru
      _
    // Predicated region
    $region14: #{tpu_custom_call.1} parent=1 // pred_check
      _
    $region15: #{tpu_custom_call.1} parent=1 // pred_check_branch
      %38 = sbr.rel (0) target = $region17
    $region16: #{tpu_custom_call.1} parent=1 // pred_region
      %40 = dma.done [#allocation3], 128
    $region17: #{tpu_custom_call.1} parent=1 // pred_fallthru
      _
    // Predicated region
    $region18: #{tpu_custom_call.1} parent=1 // pred_check
      _
    $region19: #{tpu_custom_call.1} parent=1 // pred_check_branch
      %42 = sbr.rel (0) target = $region21
    $region20: #{tpu_custom_call.1} parent=1 // pred_region
      %44 = dma.done [#allocation6], 256
    $region21: #{tpu_custom_call.1} parent=1 // pred_fallthru
      _
    %v45 = vld [vmem:[#allocation2] sm:$0xff]
    %v46 = vld [vmem:[#allocation5] sm:$0xff]
    %v47 = vld [vmem:[#allocation5 + $0x8] sm:$0xff]
    %v48 = vld [vmem:[%s2] sm:$0x1]
    %v50 = vperm.slane %v48, 0
    %vm52 = vcmask 261120
    %v54 = vsel %vm52, %v45, 0
    %v57 = vsel %vm52, %v46, 0
    %v60 = vsel %vm52, %v47, 0
    %62 = vmatpush.xpose.msra.mxu0 0.0
    %63 = vmatpush.xpose.msra.mxu0 0.0
    %64 = vmatpush.xpose.msra.mxu0 0.0
    %65 = vmatpush.xpose.msra.mxu0 0.0
    %66 = vmatpush.xpose.msra.mxu0 0.0
    %67 = vmatpush.xpose.msra.mxu0 0.0
    %68 = vmatpush.xpose.msra.mxu0 0.0
    %69 = vmatpush.xpose.msra.mxu0 0.0
    %70 = vmatpush.xpose.msra.mxu0 0.0
    %71 = vmatpush.xpose.msra.mxu0 0.0
    %72 = vmatpush.xpose.msra.mxu0 0.0
    %73 = vmatpush.xpose.msra.mxu0 0.0
    %74 = vmatpush.xpose.msra.mxu0 0.0
    %75 = vmatpush.xpose.msra.mxu0 0.0
    %76 = vmatpush.xpose.msra.mxu0 %v60
    %77 = vmatpush.xpose.msra.mxu0 %v57
    %78 = vmatmul.f32.gmra.mxu0 %v54
    %v79 = vpop.f32.mrf.mxu0
    %v80 = vadd.f32 %v50, %v79
    %81 = vdwg.mxu0
    %vm82 = vcmask 130048
    %83 = vst.msk [vmem:[#allocation7] sm:$0xff] %vm82, %v80
    // Predicated region
    $region22: #{tpu_custom_call.1} parent=1 // pred_check
      _
    $region23: #{tpu_custom_call.1} parent=1 // pred_check_branch
      %85 = sbr.rel (0) target = $region25
    $region24: #{tpu_custom_call.1} parent=1 // pred_region
      %87 = vsyncadd [#allocation4], 0
      %s89 = sshll.u32 [#allocation7], 4
      %s90 = int_to_ptr.vmem [resolvable:$true] %s89
      %s91 = sshll.u32 %s3, 4
      %s92 = int_to_ptr.hbm [resolvable:$true] %s91
      %94 = dma.vmem_to_hbm [thread:$0]  %s90, 128, %s92, [#allocation4]
    $region25: #{tpu_custom_call.1} parent=1 // pred_fallthru
      _
    // Predicated region
    $region26: #{tpu_custom_call.1} parent=1 // pred_check
      _
    $region27: #{tpu_custom_call.1} parent=1 // pred_check_branch
      %96 = sbr.rel (0) target = $region29
    $region28: #{tpu_custom_call.1} parent=1 // pred_region
      %98 = dma.done [#allocation4], 128
    $region29: #{tpu_custom_call.1} parent=1 // pred_fallthru
      _
    %99 = vsyncpa [#allocation3], 1
    %100 = vsyncpa [#allocation6], 1
    %101 = vsyncpa [#allocation4], 1

</llo_original>
